<compile_context>
chip_gen: v7x
topology: tpu7x:2x2x1
jax: 0.10.0
libtpu: 0.0.40
codegen_flags: <defaults>
</compile_context>

<pallas_src>
import jax
import jax.numpy as jnp
from jax import lax
from jax.experimental import pallas as pl
from jax.experimental.pallas import tpu as pltpu


# Problems with at most this many tokens run as a single grid step.
_MAX_SINGLE_TILE_ROWS = 1024
# Row tile for the multi-tile path (was 256: too small to amortize the
# ~0.35 us fixed per-step pipeline overhead).
_LARGE_TILE_ROWS = 1024
# Only bother single-buffering the (constant-index) table once it is big
# enough for the saved VMEM buffer to matter.
_BUFFERED_TABLE_BYTES = 1 << 20
# Raise the scoped VMEM limit for multi-MiB tables (stay well under v7x's
# 64 MiB physical VMEM; v5e/v6e have 128 MiB).
_VMEM_RAISE_TABLE_BYTES = 4 << 20
_VMEM_LIMIT_BYTES = 48 << 20
# Above this table size, stop holding the whole table in VMEM (v7x budget)
# and fall back to a scalar-prefetch row gather.
_ROW_GATHER_TABLE_BYTES = 16 << 20


def prepare_emoji_table(weight):
    """One-time parameter prep, hoisted out of the per-call jitted path."""
    # TODO(synk): if the consumer tolerates bf16 activations, store/emit bf16
    # here to halve table DMA and output HBM bytes (big win on v5e/v6e).
    return jnp.asarray(weight, dtype=jnp.float32)


def _onehot_matmul_kernel(ids_ref, table_ref, out_ref):
    # ids_ref:   (1, 1, TILE) int32   -- lane-contiguous token ids for this tile
    # table_ref: (V, D)       float32 -- full table, VMEM resident
    # out_ref:   (TILE, D)    float32
    ids = ids_ref[0]                                              # (1, TILE)
    vocab = table_ref.shape[0]
    tile = ids.shape[-1]
    # One-hot directly in (V, TILE) orientation: ids only need a sublane
    # broadcast; no relayout / transpose of the id vector or the one-hot.
    row = lax.broadcasted_iota(jnp.int32, (vocab, tile), 0)       # (V, TILE)
    onehot_t = (row == ids).astype(table_ref.dtype)               # (V, TILE)
    # Gather via MXU matmul, contracting dim 0 of both operands (no explicit
    # transpose).  precision=HIGHEST keeps the f32 table exact through the
    # bf16 MXU passes -> bit parity with table[ids].
    out_ref[...] = lax.dot_general(
        onehot_t,
        table_ref[...],
        dimension_numbers=(((0,), (0,)), ((), ())),
        preferred_element_type=jnp.float32,
        precision=lax.Precision.HIGHEST,
    ).astype(out_ref.dtype)


def _row_gather_kernel(ids_ref, table_row_ref, out_ref):
    # Scalar-prefetch path: the ids live in SMEM and drive the table BlockSpec
    # index_map, so each grid step DMAs exactly one (1, D) row HBM->VMEM.
    del ids_ref  # consumed by the index_maps, not the body
    out_ref[...] = table_row_ref[...]


@jax.jit
def emoji_embedding(emojis, table):
    """emojis: (B, S) integer ids, table: (V, D) float -> (B, S, D) float32."""
    B, S = emojis.shape
    V, D = table.shape
    n = B * S

    table_f32 = table.astype(jnp.float32)  # no-op if prepare_emoji_table was used
    ids = emojis.reshape(-1).astype(jnp.int32)
    table_bytes = V * D * 4

    # ---- Large-vocab fallback (v7x: only 64 MiB VMEM): row gather, table
    # ---- stays in HBM, ids prefetched to SMEM and used in the index_map.
    if table_bytes > _ROW_GATHER_TABLE_BYTES:
        # TODO(synk): batch multiple rows per grid step to amortize per-step
        # overhead; one row/step is the simplest correct form.
        out = pl.pallas_call(
            _row_gather_kernel,
            out_shape=jax.ShapeDtypeStruct((n, D), jnp.float32),
            grid_spec=pltpu.PrefetchScalarGridSpec(
                num_scalar_prefetch=1,
                grid=(n,),
                in_specs=[pl.BlockSpec((1, D), lambda i, ids_s: (ids_s[i], 0))],
                out_specs=pl.BlockSpec((1, D), lambda i, ids_s: (i, 0)),
            ),
        )(ids, table_f32)
        return out.reshape(B, S, D)

    # ---- Small/medium vocab: one-hot matmul, whole table VMEM resident.
    if n <= _MAX_SINGLE_TILE_ROWS:
        tile = max(8, pl.cdiv(n, 8) * 8)   # sublane-aligned, single grid step
    else:
        tile = _LARGE_TILE_ROWS
    n_pad = pl.cdiv(n, tile) * tile
    n_tiles = n_pad // tile

    if n_pad != n:
        # Padded rows read table row 0 and are sliced off below.
        ids = jnp.pad(ids, (0, n_pad - n))
    ids = ids.reshape(n_tiles, 1, tile)    # lane-contiguous id blocks

    # Constant block index -> table is DMA'd into VMEM only once; single-buffer
    # it once its footprint is nontrivial.
    table_spec_kwargs = {}
    if table_bytes >= _BUFFERED_TABLE_BYTES:
        table_spec_kwargs["pipeline_mode"] = pl.Buffered(1)
    vmem_limit = _VMEM_LIMIT_BYTES if table_bytes >= _VMEM_RAISE_TABLE_BYTES else None

    out = pl.pallas_call(
        _onehot_matmul_kernel,
        out_shape=jax.ShapeDtypeStruct((n_pad, D), jnp.float32),
        grid=(n_tiles,),
        in_specs=[
            pl.BlockSpec((1, 1, tile), lambda i: (i, 0, 0)),           # ids tile
            pl.BlockSpec((V, D), lambda i: (0, 0), **table_spec_kwargs),  # table
        ],
        out_specs=pl.BlockSpec((tile, D), lambda i: (i, 0)),
        compiler_params=pltpu.CompilerParams(
            dimension_semantics=("parallel",) if n_tiles > 1 else ("arbitrary",),
            vmem_limit_bytes=vmem_limit,
        ),
    )(ids, table_f32)

    if n_pad != n:
        out = out[:n]
    return out.reshape(B, S, D)


if __name__ == "__main__":
    # config = {'emoji_vocab_size': 64, 'emoji_embedding_dim': 32}
    VOCAB = 64
    DIM = 32
    B, S = 2, 8

    key = jax.random.PRNGKey(0)
    k_tab, k_ids = jax.random.split(key)
    # Deterministic parameter init (same shape as nn.Embedding(V, D).weight),
    # prepared once outside the per-call path.
    weight = jax.random.normal(k_tab, (VOCAB, DIM), dtype=jnp.float32)
    table = prepare_emoji_table(weight)
    emojis = jax.random.randint(k_ids, (B, S), 0, VOCAB, dtype=jnp.int32)

    out = emoji_embedding(emojis, table)
    out = jax.block_until_ready(out)

    # Reference check: plain JAX gather (== torch nn.Embedding forward).
    ref = weight[emojis]
    assert out.shape == (B, S, DIM), out.shape
    assert out.dtype == jnp.float32
    assert jnp.allclose(out, ref, atol=1e-6), "mismatch vs reference gather"

    print("KERNEL_OK")
</pallas_src>

<mosaic_0001>
module attributes {stable_mosaic.version = 11 : i64} {
  func.func @_onehot_matmul_kernel(%arg0: i32, %arg1: memref<1x1x16xi32, #tpu.memory_space<vmem>>, %arg2: memref<64x32xf32, #tpu.memory_space<vmem>>, %arg3: memref<16x32xf32, #tpu.memory_space<vmem>>) attributes {dimension_semantics = [#tpu.dimension_semantics<arbitrary>], iteration_bounds = array<i64: 1>, scalar_prefetch = 0 : i64, scratch_operands = 0 : i64, tpu.core_type = #tpu.core_type<tc>, window_params = [{transform_indices = @transform_0, window_bounds = array<i64: 1, 1, 16>}, {pipeline_mode = #tpu.pipeline_mode<synchronous>, transform_indices = @transform_1, window_bounds = array<i64: 64, 32>}, {transform_indices = @transform_2, window_bounds = array<i64: 16, 32>}]} {
    %c0 = arith.constant 0 : index
    %c0_0 = arith.constant 0 : index
    %c0_1 = arith.constant 0 : index
    %0 = vector.load %arg1[%c0, %c0_0, %c0_1] : memref<1x1x16xi32, #tpu.memory_space<vmem>>, vector<1x1x16xi32>
    %1 = vector.shape_cast %0 : vector<1x1x16xi32> to vector<1x16xi32>
    %2 = tpu.iota {dimensions = array<i32: 0>} : vector<64x16xi32>
    %3 = vector.broadcast %1 : vector<1x16xi32> to vector<64x16xi32>
    %4 = arith.cmpi eq, %2, %3 : vector<64x16xi32>
    %5 = arith.extui %4 : vector<64x16xi1> to vector<64x16xi32>
    %6 = arith.sitofp %5 : vector<64x16xi32> to vector<64x16xf32>
    %c0_2 = arith.constant 0 : index
    %c0_3 = arith.constant 0 : index
    %7 = vector.load %arg2[%c0_2, %c0_3] : memref<64x32xf32, #tpu.memory_space<vmem>>, vector<64x32xf32>
    %cst = arith.constant dense<0.000000e+00> : vector<16x32xf32>
    %8 = tpu.matmul %6, %7, %cst {dimension_numbers = #tpu.dot_dimension_numbers<[0], [0], [1], [1], [0, 1, 1, 1], [], []>, precision = #tpu.contract_precision<fp32>} : vector<64x16xf32>, vector<64x32xf32>, vector<16x32xf32> -> vector<16x32xf32>
    %c0_4 = arith.constant 0 : index
    %c0_5 = arith.constant 0 : index
    %9 = vector.load %arg3[%c0_4, %c0_5] : memref<16x32xf32, #tpu.memory_space<vmem>>, vector<16x32xf32>
    tpu.vector_store %arg3[%c0_4, %c0_5], %8 {strides = array<i32>} : memref<16x32xf32, #tpu.memory_space<vmem>>, vector<16x32xf32>,
    return
  }
  func.func @transform_0(%arg0: i32) -> (i32, i32, i32) {
    %c0_i32 = arith.constant 0 : i32
    %c0_i32_0 = arith.constant 0 : i32
    %c0_i32_1 = arith.constant 0 : i32
    return %arg0, %c0_i32, %c0_i32_0 : i32, i32, i32
  }
  func.func @transform_1(%arg0: i32) -> (i32, i32) {
    %c0_i32 = arith.constant 0 : i32
    %c0_i32_0 = arith.constant 0 : i32
    %c0_i32_1 = arith.constant 0 : i32
    return %c0_i32, %c0_i32_0 : i32, i32
  }
  func.func @transform_2(%arg0: i32) -> (i32, i32) {
    %c0_i32 = arith.constant 0 : i32
    %c0_i32_0 = arith.constant 0 : i32
    return %arg0, %c0_i32 : i32, i32
  }
}

</mosaic_0001>

<llo_original>
// kernel: emoji_embedding.1
$region0: #{emoji_embedding.1}
  #allocation0 [shape = 'u32[]', space=smem, size = 0x4, offset = 0x4, fixed_abs, tag = 'smem constant byte address 0x4 - core index']
  #allocation1 [shape = 'u32[144,128]{1,0:T(1,128)}', space=vmem, size = 0x12000, scoped, tag = 'internal scratch']
  %s0 = inlined_call_operand.vmem [shape: s32[1,1,16], index: 0, kind: input, shape index: {}]
  %s1 = inlined_call_operand.vmem [shape: f32[64,32], index: 1, kind: input, shape index: {}]
  %s2 = inlined_call_operand.hbm [shape: f32[16,32], index: 2, kind: output, shape index: {}]
  %s3 = sld [smem:[#allocation0]]
  $region18: #{emoji_embedding.1} parent=0
    _
  %s5 = ssub.s32 1, %s3
  %s6 = scalar_select 0, %s5, %s3
  $region1: #{emoji_embedding.1} parent=0
    #allocation2 [shape = 'u8[8192]{0}', space=vmem, size = 0x2000, scoped, tag = 'output window, operand 0, single buffered']
    #allocation3 [shape = 's32[1]{0}', space=sflag, size = 0x4, scoped, tag = 'scoped memory for emoji_embedding.1']
    %7 = vsyncpa [#allocation3], 0
    // Predicated region
    $region2: #{emoji_embedding.1} parent=1 // pred_check
      _
    $region3: #{emoji_embedding.1} parent=1 // pred_check_branch
      %9 = sbr.rel (0) target = $region5
    $region4: #{emoji_embedding.1} parent=1 // pred_region
      _
    $region5: #{emoji_embedding.1} parent=1 // pred_fallthru
      _
    // Predicated region
    $region6: #{emoji_embedding.1} parent=1 // pred_check
      _
    $region7: #{emoji_embedding.1} parent=1 // pred_check_branch
      %11 = sbr.rel (0) target = $region9
    $region8: #{emoji_embedding.1} parent=1 // pred_region
      _
    $region9: #{emoji_embedding.1} parent=1 // pred_fallthru
      _
    %v12 = vld [vmem:[%s0] sm:$0x1]
    %v13 = vlaneseq
    %v14 = vshrl.u32 %v13, 7
    %v15 = vadd.s32 %v14, 8
    %v16 = vadd.s32 %v14, 16
    %v17 = vadd.s32 %v14, 24
    %v18 = vadd.s32 %v14, 32
    %v19 = vadd.s32 %v14, 40
    %v20 = vadd.s32 %v14, 48
    %v21 = vadd.s32 %v14, 56
    %v22 = vlaneseq
    %v23 = vshrl.u32 %v22, 7
    %v24 = vsub.s32 0, %v23
    %v25 = vrot.slane %v12, %v24
    %vm26 = vcmp.eq.s32.totalorder %v14, %v25
    %vm27 = vcmp.eq.s32.totalorder %v15, %v25
    %vm28 = vcmp.eq.s32.totalorder %v16, %v25
    %vm29 = vcmp.eq.s32.totalorder %v17, %v25
    %vm30 = vcmp.eq.s32.totalorder %v18, %v25
    %vm31 = vcmp.eq.s32.totalorder %v19, %v25
    %vm32 = vcmp.eq.s32.totalorder %v20, %v25
    %vm33 = vcmp.eq.s32.totalorder %v21, %v25
    %v34 = vsel %vm26, 1, 0
    %v35 = vsel %vm27, 1, 0
    %v36 = vsel %vm28, 1, 0
    %v37 = vsel %vm29, 1, 0
    %v38 = vsel %vm30, 1, 0
    %v39 = vsel %vm31, 1, 0
    %v40 = vsel %vm32, 1, 0
    %v41 = vsel %vm33, 1, 0
    %v42 = vcvt.s32.f32 %v34
    %v43 = vcvt.s32.f32 %v35
    %v44 = vcvt.s32.f32 %v36
    %v45 = vcvt.s32.f32 %v37
    %v46 = vcvt.s32.f32 %v38
    %v47 = vcvt.s32.f32 %v39
    %v48 = vcvt.s32.f32 %v40
    %v49 = vcvt.s32.f32 %v41
    %v50 = vld [vmem:[%s1] sm:$0xff]
    %v51 = vld [vmem:[%s1 + $0x8] sm:$0xff]
    %v52 = vld [vmem:[%s1 + $0x10] sm:$0xff]
    %v53 = vld [vmem:[%s1 + $0x18] sm:$0xff]
    %v54 = vld [vmem:[%s1 + $0x20] sm:$0xff]
    %v55 = vld [vmem:[%s1 + $0x28] sm:$0xff]
    %v56 = vld [vmem:[%s1 + $0x30] sm:$0xff]
    %v57 = vld [vmem:[%s1 + $0x38] sm:$0xff]
    %58 = vxpose.xlu0.b32.start [1/16] %v42, 128
    %59 = vxpose.xlu0.b32.cont [2/16] %v43, 128
    %60 = vxpose.xlu0.b32.cont [3/16] %v44, 128
    %61 = vxpose.xlu0.b32.cont [4/16] %v45, 128
    %62 = vxpose.xlu0.b32.cont [5/16] %v46, 128
    %63 = vxpose.xlu0.b32.cont [6/16] %v47, 128
    %64 = vxpose.xlu0.b32.cont [7/16] %v48, 128
    %65 = vxpose.xlu0.b32.cont [8/16] %v49, 128
    %66 = vxpose.xlu0.b32.cont [9/16] 0.0, 128
    %67 = vxpose.xlu0.b32.cont [10/16] 0.0, 128
    %68 = vxpose.xlu0.b32.cont [11/16] 0.0, 128
    %69 = vxpose.xlu0.b32.cont [12/16] 0.0, 128
    %70 = vxpose.xlu0.b32.cont [13/16] 0.0, 128
    %71 = vxpose.xlu0.b32.cont [14/16] 0.0, 128
    %72 = vxpose.xlu0.b32.cont [15/16] 0.0, 128
    %73 = vxpose.xlu0.b32.end [16/16] 0.0, 128
    %v74 = vpop.trf.xlu0
    %v75 = vpop.trf.xlu0
    %v76 = vpop.trf.xlu0
    %v77 = vpop.trf.xlu0
    %v78 = vpop.trf.xlu0
    %v79 = vpop.trf.xlu0
    %v80 = vpop.trf.xlu0
    %v81 = vpop.trf.xlu0
    %v82 = vpop.trf.xlu0
    %v83 = vpop.trf.xlu0
    %v84 = vpop.trf.xlu0
    %v85 = vpop.trf.xlu0
    %v86 = vpop.trf.xlu0
    %v87 = vpop.trf.xlu0
    %v88 = vpop.trf.xlu0
    %v89 = vpop.trf.xlu0
    %vm90 = vcmask 523264
    %v92 = vsel %vm90, %v74, 0
    %v95 = vsel %vm90, %v75, 0
    %97 = vmatprep.subr.mxu0 0.0
    %v98 = vand.u32 %v50, 4294901760
    %99 = vmatpush1.msra.mxu0 %v98
    %100 = vmatprep.subr.mxu0 0.0
    %v101 = vand.u32 %v51, 4294901760
    %102 = vmatpush1.msra.mxu0 %v101
    %103 = vmatprep.subr.mxu0 0.0
    %v104 = vand.u32 %v52, 4294901760
    %105 = vmatpush1.msra.mxu0 %v104
    %106 = vmatprep.subr.mxu0 0.0
    %v107 = vand.u32 %v53, 4294901760
    %108 = vmatpush1.msra.mxu0 %v107
    %109 = vmatprep.subr.mxu0 0.0
    %v110 = vand.u32 %v54, 4294901760
    %111 = vmatpush1.msra.mxu0 %v110
    %112 = vmatprep.subr.mxu0 0.0
    %v113 = vand.u32 %v55, 4294901760
    %114 = vmatpush1.msra.mxu0 %v113
    %115 = vmatprep.subr.mxu0 0.0
    %v116 = vand.u32 %v56, 4294901760
    %117 = vmatpush1.msra.mxu0 %v116
    %118 = vmatprep.subr.mxu0 0.0
    %v119 = vand.u32 %v57, 4294901760
    %120 = vmatpush1.msra.mxu0 %v119
    %121 = vmatprep.subr.mxu0 0.0
    %122 = vmatpush1.msra.mxu0 0.0
    %123 = vmatprep.subr.mxu0 0.0
    %124 = vmatpush1.msra.mxu0 0.0
    %125 = vmatprep.subr.mxu0 0.0
    %126 = vmatpush1.msra.mxu0 0.0
    %127 = vmatprep.subr.mxu0 0.0
    %128 = vmatpush1.msra.mxu0 0.0
    %129 = vmatprep.subr.mxu0 0.0
    %130 = vmatpush1.msra.mxu0 0.0
    %131 = vmatprep.subr.mxu0 0.0
    %132 = vmatpush1.msra.mxu0 0.0
    %133 = vmatprep.subr.mxu0 0.0
    %134 = vmatpush1.msra.mxu0 0.0
    %135 = vmatprep.subr.mxu0 0.0
    %136 = vmatpush1.msra.mxu0 0.0
    %137 = vmatprep.subr.mxu0 0.0
    %138 = vmatpush1.msra.mxu0 0.0
    %139 = vmatprep.subr.mxu0 0.0
    %140 = vmatpush1.msra.mxu0 0.0
    %141 = vmatprep.subr.mxu0 0.0
    %142 = vmatpush1.msra.mxu0 0.0
    %143 = vmatprep.subr.mxu0 0.0
    %144 = vmatpush1.msra.mxu0 0.0
    %145 = vmatprep.subr.mxu0 0.0
    %146 = vmatpush1.msra.mxu0 0.0
    %147 = vmatprep.subr.mxu0 0.0
    %148 = vmatpush1.msra.mxu0 0.0
    %149 = vmatprep.subr.mxu0 0.0
    %150 = vmatpush1.msra.mxu0 0.0
    %151 = vmatprep.subr.mxu0 0.0
    %152 = vmatpush1.msra.mxu0 0.0
    %153 = vmatprep.subr.mxu0 0.0
    %154 = vmatpush1.msra.mxu0 0.0
    %155 = vmatprep.subr.mxu0 0.0
    %156 = vmatpush1.msra.mxu0 0.0
    %157 = vmatprep.subr.mxu0 0.0
    %158 = vmatpush1.msra.mxu0 0.0
    %159 = vmatprep.subr.mxu0 0.0
    %160 = vmatpush1.msra.mxu0 0.0
    %161 = vmatprep.subr.mxu0 0.0
    %162 = vmatpush1.msra.mxu0 0.0
    %163 = vmatprep.subr.mxu0 0.0
    %164 = vmatpush1.msra.mxu0 0.0
    %165 = vmatprep.subr.mxu0 0.0
    %166 = vmatpush1.msra.mxu0 0.0
    %167 = vmatprep.subr.mxu0 0.0
    %168 = vmatpush1.msra.mxu0 0.0
    %169 = vmatprep.mubr.f32.mxu0 0.0
    %v170 = vand.u32 %v92, 4294901760
    %v171 = vsub.f32 %v92, %v170
    %v172 = vand.u32 %v171, 4294901760
    %v173 = vsub.f32 %v171, %v172
    %v174 = vand.u32 %v173, 4294901760
    %175 = vmatmul.mubr.f32.gmra.mrb[0].mxu0 %v174
    %v176 = vpop.f32.mrb[0].mxu0
    %v177 = vadd.f32 0.0, %v176
    %v178 = vpop.f32.mrb[0].mxu0
    %179 = vmatprep.mubr.f32.mxu0 0.0
    %v180 = vand.u32 %v95, 4294901760
    %v181 = vsub.f32 %v95, %v180
    %v182 = vand.u32 %v181, 4294901760
    %v183 = vsub.f32 %v181, %v182
    %v184 = vand.u32 %v183, 4294901760
    %185 = vmatmul.mubr.f32.gmra.mrb[0].mxu0 %v184
    %v186 = vpop.f32.mrb[0].mxu0
    %v187 = vadd.f32 0.0, %v186
    %v188 = vpop.f32.mrb[0].mxu0
    %189 = vdwg.mxu0
    %190 = vmatprep.subr.mxu0 0.0
    %v191 = vand.u32 %v50, 4294901760
    %v192 = vsub.f32 %v50, %v191
    %v193 = vand.u32 %v192, 4294901760
    %v194 = vsub.f32 %v192, %v193
    %v195 = vand.u32 %v194, 4294901760
    %196 = vmatpush1.msra.mxu0 %v195
    %197 = vmatprep.subr.mxu0 0.0
    %v198 = vand.u32 %v51, 4294901760
    %v199 = vsub.f32 %v51, %v198
    %v200 = vand.u32 %v199, 4294901760
    %v201 = vsub.f32 %v199, %v200
    %v202 = vand.u32 %v201, 4294901760
    %203 = vmatpush1.msra.mxu0 %v202
    %204 = vmatprep.subr.mxu0 0.0
    %v205 = vand.u32 %v52, 4294901760
    %v206 = vsub.f32 %v52, %v205
    %v207 = vand.u32 %v206, 4294901760
    %v208 = vsub.f32 %v206, %v207
    %v209 = vand.u32 %v208, 4294901760
    %210 = vmatpush1.msra.mxu0 %v209
    %211 = vmatprep.subr.mxu0 0.0
    %v212 = vand.u32 %v53, 4294901760
    %v213 = vsub.f32 %v53, %v212
    %v214 = vand.u32 %v213, 4294901760
    %v215 = vsub.f32 %v213, %v214
    %v216 = vand.u32 %v215, 4294901760
    %217 = vmatpush1.msra.mxu0 %v216
    %218 = vmatprep.subr.mxu0 0.0
    %v219 = vand.u32 %v54, 4294901760
    %v220 = vsub.f32 %v54, %v219
    %v221 = vand.u32 %v220, 4294901760
    %v222 = vsub.f32 %v220, %v221
    %v223 = vand.u32 %v222, 4294901760
    %224 = vmatpush1.msra.mxu0 %v223
    %225 = vmatprep.subr.mxu0 0.0
    %v226 = vand.u32 %v55, 4294901760
    %v227 = vsub.f32 %v55, %v226
    %v228 = vand.u32 %v227, 4294901760
    %v229 = vsub.f32 %v227, %v228
    %v230 = vand.u32 %v229, 4294901760
    %231 = vmatpush1.msra.mxu0 %v230
    %232 = vmatprep.subr.mxu0 0.0
    %v233 = vand.u32 %v56, 4294901760
    %v234 = vsub.f32 %v56, %v233
    %v235 = vand.u32 %v234, 4294901760
    %v236 = vsub.f32 %v234, %v235
    %v237 = vand.u32 %v236, 4294901760
    %238 = vmatpush1.msra.mxu0 %v237
    %239 = vmatprep.subr.mxu0 0.0
    %v240 = vand.u32 %v57, 4294901760
    %v241 = vsub.f32 %v57, %v240
    %v242 = vand.u32 %v241, 4294901760
    %v243 = vsub.f32 %v241, %v242
    %v244 = vand.u32 %v243, 4294901760
    %245 = vmatpush1.msra.mxu0 %v244
    %246 = vmatprep.subr.mxu0 0.0
    %247 = vmatpush1.msra.mxu0 0.0
    %248 = vmatprep.subr.mxu0 0.0
    %249 = vmatpush1.msra.mxu0 0.0
    %250 = vmatprep.subr.mxu0 0.0
    %251 = vmatpush1.msra.mxu0 0.0
    %252 = vmatprep.subr.mxu0 0.0
    %253 = vmatpush1.msra.mxu0 0.0
    %254 = vmatprep.subr.mxu0 0.0
    %255 = vmatpush1.msra.mxu0 0.0
    %256 = vmatprep.subr.mxu0 0.0
    %257 = vmatpush1.msra.mxu0 0.0
    %258 = vmatprep.subr.mxu0 0.0
    %259 = vmatpush1.msra.mxu0 0.0
    %260 = vmatprep.subr.mxu0 0.0
    %261 = vmatpush1.msra.mxu0 0.0
    %262 = vmatprep.subr.mxu0 0.0
    %263 = vmatpush1.msra.mxu0 0.0
    %264 = vmatprep.subr.mxu0 0.0
    %265 = vmatpush1.msra.mxu0 0.0
    %266 = vmatprep.subr.mxu0 0.0
    %267 = vmatpush1.msra.mxu0 0.0
    %268 = vmatprep.subr.mxu0 0.0
    %269 = vmatpush1.msra.mxu0 0.0
    %270 = vmatprep.subr.mxu0 0.0
    %271 = vmatpush1.msra.mxu0 0.0
    %272 = vmatprep.subr.mxu0 0.0
    %273 = vmatpush1.msra.mxu0 0.0
    %274 = vmatprep.subr.mxu0 0.0
    %275 = vmatpush1.msra.mxu0 0.0
    %276 = vmatprep.subr.mxu0 0.0
    %277 = vmatpush1.msra.mxu0 0.0
    %278 = vmatprep.subr.mxu0 0.0
    %279 = vmatpush1.msra.mxu0 0.0
    %280 = vmatprep.subr.mxu0 0.0
    %281 = vmatpush1.msra.mxu0 0.0
    %282 = vmatprep.subr.mxu0 0.0
    %283 = vmatpush1.msra.mxu0 0.0
    %284 = vmatprep.subr.mxu0 0.0
    %285 = vmatpush1.msra.mxu0 0.0
    %286 = vmatprep.subr.mxu0 0.0
    %287 = vmatpush1.msra.mxu0 0.0
    %288 = vmatprep.subr.mxu0 0.0
    %289 = vmatpush1.msra.mxu0 0.0
    %290 = vmatprep.subr.mxu0 0.0
    %291 = vmatpush1.msra.mxu0 0.0
    %292 = vmatprep.subr.mxu0 0.0
    %293 = vmatpush1.msra.mxu0 0.0
    %294 = vmatprep.mubr.f32.mxu0 0.0
    %v295 = vand.u32 %v92, 4294901760
    %296 = vmatmul.mubr.f32.gmra.mrb[0].mxu0 %v295
    %v297 = vpop.f32.mrb[0].mxu0
    %v298 = vadd.f32 %v177, %v297
    %v299 = vpop.f32.mrb[0].mxu0
    %300 = vmatprep.mubr.f32.mxu0 0.0
    %v301 = vand.u32 %v95, 4294901760
    %302 = vmatmul.mubr.f32.gmra.mrb[0].mxu0 %v301
    %v303 = vpop.f32.mrb[0].mxu0
    %v304 = vadd.f32 %v187, %v303
    %v305 = vpop.f32.mrb[0].mxu0
    %306 = vdwg.mxu0
    %307 = vmatprep.subr.mxu0 0.0
    %v308 = vand.u32 %v50, 4294901760
    %v309 = vsub.f32 %v50, %v308
    %310 = vmatpush1.msra.mxu0 %v309
    %311 = vmatprep.subr.mxu0 0.0
    %v312 = vand.u32 %v51, 4294901760
    %v313 = vsub.f32 %v51, %v312
    %314 = vmatpush1.msra.mxu0 %v313
    %315 = vmatprep.subr.mxu0 0.0
    %v316 = vand.u32 %v52, 4294901760
    %v317 = vsub.f32 %v52, %v316
    %318 = vmatpush1.msra.mxu0 %v317
    %319 = vmatprep.subr.mxu0 0.0
    %v320 = vand.u32 %v53, 4294901760
    %v321 = vsub.f32 %v53, %v320
    %322 = vmatpush1.msra.mxu0 %v321
    %323 = vmatprep.subr.mxu0 0.0
    %v324 = vand.u32 %v54, 4294901760
    %v325 = vsub.f32 %v54, %v324
    %326 = vmatpush1.msra.mxu0 %v325
    %327 = vmatprep.subr.mxu0 0.0
    %v328 = vand.u32 %v55, 4294901760
    %v329 = vsub.f32 %v55, %v328
    %330 = vmatpush1.msra.mxu0 %v329
    %331 = vmatprep.subr.mxu0 0.0
    %v332 = vand.u32 %v56, 4294901760
    %v333 = vsub.f32 %v56, %v332
    %334 = vmatpush1.msra.mxu0 %v333
    %335 = vmatprep.subr.mxu0 0.0
    %v336 = vand.u32 %v57, 4294901760
    %v337 = vsub.f32 %v57, %v336
    %338 = vmatpush1.msra.mxu0 %v337
    %339 = vmatprep.subr.mxu0 0.0
    %340 = vmatpush1.msra.mxu0 0.0
    %341 = vmatprep.subr.mxu0 0.0
    %342 = vmatpush1.msra.mxu0 0.0
    %343 = vmatprep.subr.mxu0 0.0
    %344 = vmatpush1.msra.mxu0 0.0
    %345 = vmatprep.subr.mxu0 0.0
    %346 = vmatpush1.msra.mxu0 0.0
    %347 = vmatprep.subr.mxu0 0.0
    %348 = vmatpush1.msra.mxu0 0.0
    %349 = vmatprep.subr.mxu0 0.0
    %350 = vmatpush1.msra.mxu0 0.0
    %351 = vmatprep.subr.mxu0 0.0
    %352 = vmatpush1.msra.mxu0 0.0
    %353 = vmatprep.subr.mxu0 0.0
    %354 = vmatpush1.msra.mxu0 0.0
    %355 = vmatprep.subr.mxu0 0.0
    %356 = vmatpush1.msra.mxu0 0.0
    %357 = vmatprep.subr.mxu0 0.0
    %358 = vmatpush1.msra.mxu0 0.0
    %359 = vmatprep.subr.mxu0 0.0
    %360 = vmatpush1.msra.mxu0 0.0
    %361 = vmatprep.subr.mxu0 0.0
    %362 = vmatpush1.msra.mxu0 0.0
    %363 = vmatprep.subr.mxu0 0.0
    %364 = vmatpush1.msra.mxu0 0.0
    %365 = vmatprep.subr.mxu0 0.0
    %366 = vmatpush1.msra.mxu0 0.0
    %367 = vmatprep.subr.mxu0 0.0
    %368 = vmatpush1.msra.mxu0 0.0
    %369 = vmatprep.subr.mxu0 0.0
    %370 = vmatpush1.msra.mxu0 0.0
    %371 = vmatprep.subr.mxu0 0.0
    %372 = vmatpush1.msra.mxu0 0.0
    %373 = vmatprep.subr.mxu0 0.0
    %374 = vmatpush1.msra.mxu0 0.0
    %375 = vmatprep.subr.mxu0 0.0
    %376 = vmatpush1.msra.mxu0 0.0
    %377 = vmatprep.subr.mxu0 0.0
    %378 = vmatpush1.msra.mxu0 0.0
    %379 = vmatprep.subr.mxu0 0.0
    %380 = vmatpush1.msra.mxu0 0.0
    %381 = vmatprep.subr.mxu0 0.0
    %382 = vmatpush1.msra.mxu0 0.0
    %383 = vmatprep.subr.mxu0 0.0
    %384 = vmatpush1.msra.mxu0 0.0
    %385 = vmatprep.subr.mxu0 0.0
    %386 = vmatpush1.msra.mxu0 0.0
    %387 = vmatprep.mubr.f32.mxu0 0.0
    %v388 = vand.u32 %v92, 4294901760
    %v389 = vsub.f32 %v92, %v388
    %390 = vmatmul.mubr.f32.gmra.mrb[0].mxu0 %v389
    %v391 = vpop.f32.mrb[0].mxu0
    %v392 = vadd.f32 %v298, %v391
    %v393 = vpop.f32.mrb[0].mxu0
    %394 = vmatprep.mubr.f32.mxu0 0.0
    %v395 = vand.u32 %v95, 4294901760
    %v396 = vsub.f32 %v95, %v395
    %397 = vmatmul.mubr.f32.gmra.mrb[0].mxu0 %v396
    %v398 = vpop.f32.mrb[0].mxu0
    %v399 = vadd.f32 %v304, %v398
    %v400 = vpop.f32.mrb[0].mxu0
    %401 = vdwg.mxu0
    %402 = vmatprep.subr.mxu0 0.0
    %v403 = vand.u32 %v50, 4294901760
    %404 = vmatpush1.msra.mxu0 %v403
    %405 = vmatprep.subr.mxu0 0.0
    %v406 = vand.u32 %v51, 4294901760
    %407 = vmatpush1.msra.mxu0 %v406
    %408 = vmatprep.subr.mxu0 0.0
    %v409 = vand.u32 %v52, 4294901760
    %410 = vmatpush1.msra.mxu0 %v409
    %411 = vmatprep.subr.mxu0 0.0
    %v412 = vand.u32 %v53, 4294901760
    %413 = vmatpush1.msra.mxu0 %v412
    %414 = vmatprep.subr.mxu0 0.0
    %v415 = vand.u32 %v54, 4294901760
    %416 = vmatpush1.msra.mxu0 %v415
    %417 = vmatprep.subr.mxu0 0.0
    %v418 = vand.u32 %v55, 4294901760
    %419 = vmatpush1.msra.mxu0 %v418
    %420 = vmatprep.subr.mxu0 0.0
    %v421 = vand.u32 %v56, 4294901760
    %422 = vmatpush1.msra.mxu0 %v421
    %423 = vmatprep.subr.mxu0 0.0
    %v424 = vand.u32 %v57, 4294901760
    %425 = vmatpush1.msra.mxu0 %v424
    %426 = vmatprep.subr.mxu0 0.0
    %427 = vmatpush1.msra.mxu0 0.0
    %428 = vmatprep.subr.mxu0 0.0
    %429 = vmatpush1.msra.mxu0 0.0
    %430 = vmatprep.subr.mxu0 0.0
    %431 = vmatpush1.msra.mxu0 0.0
    %432 = vmatprep.subr.mxu0 0.0
    %433 = vmatpush1.msra.mxu0 0.0
    %434 = vmatprep.subr.mxu0 0.0
    %435 = vmatpush1.msra.mxu0 0.0
    %436 = vmatprep.subr.mxu0 0.0
    %437 = vmatpush1.msra.mxu0 0.0
    %438 = vmatprep.subr.mxu0 0.0
    %439 = vmatpush1.msra.mxu0 0.0
    %440 = vmatprep.subr.mxu0 0.0
    %441 = vmatpush1.msra.mxu0 0.0
    %442 = vmatprep.subr.mxu0 0.0
    %443 = vmatpush1.msra.mxu0 0.0
    %444 = vmatprep.subr.mxu0 0.0
    %445 = vmatpush1.msra.mxu0 0.0
    %446 = vmatprep.subr.mxu0 0.0
    %447 = vmatpush1.msra.mxu0 0.0
    %448 = vmatprep.subr.mxu0 0.0
    %449 = vmatpush1.msra.mxu0 0.0
    %450 = vmatprep.subr.mxu0 0.0
    %451 = vmatpush1.msra.mxu0 0.0
    %452 = vmatprep.subr.mxu0 0.0
    %453 = vmatpush1.msra.mxu0 0.0
    %454 = vmatprep.subr.mxu0 0.0
    %455 = vmatpush1.msra.mxu0 0.0
    %456 = vmatprep.subr.mxu0 0.0
    %457 = vmatpush1.msra.mxu0 0.0
    %458 = vmatprep.subr.mxu0 0.0
    %459 = vmatpush1.msra.mxu0 0.0
    %460 = vmatprep.subr.mxu0 0.0
    %461 = vmatpush1.msra.mxu0 0.0
    %462 = vmatprep.subr.mxu0 0.0
    %463 = vmatpush1.msra.mxu0 0.0
    %464 = vmatprep.subr.mxu0 0.0
    %465 = vmatpush1.msra.mxu0 0.0
    %466 = vmatprep.subr.mxu0 0.0
    %467 = vmatpush1.msra.mxu0 0.0
    %468 = vmatprep.subr.mxu0 0.0
    %469 = vmatpush1.msra.mxu0 0.0
    %470 = vmatprep.subr.mxu0 0.0
    %471 = vmatpush1.msra.mxu0 0.0
    %472 = vmatprep.subr.mxu0 0.0
    %473 = vmatpush1.msra.mxu0 0.0
    %474 = vmatprep.mubr.f32.mxu0 0.0
    %v475 = vand.u32 %v92, 4294901760
    %v476 = vsub.f32 %v92, %v475
    %v477 = vand.u32 %v476, 4294901760
    %478 = vmatmul.mubr.f32.gmra.mrb[0].mxu0 %v477
    %v479 = vpop.f32.mrb[0].mxu0
    %v480 = vadd.f32 %v392, %v479
    %v481 = vpop.f32.mrb[0].mxu0
    %482 = vmatprep.mubr.f32.mxu0 0.0
    %v483 = vand.u32 %v95, 4294901760
    %v484 = vsub.f32 %v95, %v483
    %v485 = vand.u32 %v484, 4294901760
    %486 = vmatmul.mubr.f32.gmra.mrb[0].mxu0 %v485
    %v487 = vpop.f32.mrb[0].mxu0
    %v488 = vadd.f32 %v399, %v487
    %v489 = vpop.f32.mrb[0].mxu0
    %490 = vdwg.mxu0
    %491 = vmatprep.subr.mxu0 0.0
    %v492 = vand.u32 %v50, 4294901760
    %v493 = vsub.f32 %v50, %v492
    %v494 = vand.u32 %v493, 4294901760
    %495 = vmatpush1.msra.mxu0 %v494
    %496 = vmatprep.subr.mxu0 0.0
    %v497 = vand.u32 %v51, 4294901760
    %v498 = vsub.f32 %v51, %v497
    %v499 = vand.u32 %v498, 4294901760
    %500 = vmatpush1.msra.mxu0 %v499
    %501 = vmatprep.subr.mxu0 0.0
    %v502 = vand.u32 %v52, 4294901760
    %v503 = vsub.f32 %v52, %v502
    %v504 = vand.u32 %v503, 4294901760
    %505 = vmatpush1.msra.mxu0 %v504
    %506 = vmatprep.subr.mxu0 0.0
    %v507 = vand.u32 %v53, 4294901760
    %v508 = vsub.f32 %v53, %v507
    %v509 = vand.u32 %v508, 4294901760
    %510 = vmatpush1.msra.mxu0 %v509
    %511 = vmatprep.subr.mxu0 0.0
    %v512 = vand.u32 %v54, 4294901760
    %v513 = vsub.f32 %v54, %v512
    %v514 = vand.u32 %v513, 4294901760
    %515 = vmatpush1.msra.mxu0 %v514
    %516 = vmatprep.subr.mxu0 0.0
    %v517 = vand.u32 %v55, 4294901760
    %v518 = vsub.f32 %v55, %v517
    %v519 = vand.u32 %v518, 4294901760
    %520 = vmatpush1.msra.mxu0 %v519
    %521 = vmatprep.subr.mxu0 0.0
    %v522 = vand.u32 %v56, 4294901760
    %v523 = vsub.f32 %v56, %v522
    %v524 = vand.u32 %v523, 4294901760
    %525 = vmatpush1.msra.mxu0 %v524
    %526 = vmatprep.subr.mxu0 0.0
    %v527 = vand.u32 %v57, 4294901760
    %v528 = vsub.f32 %v57, %v527
    %v529 = vand.u32 %v528, 4294901760
    %530 = vmatpush1.msra.mxu0 %v529
    %531 = vmatprep.subr.mxu0 0.0
    %532 = vmatpush1.msra.mxu0 0.0
    %533 = vmatprep.subr.mxu0 0.0
    %534 = vmatpush1.msra.mxu0 0.0
    %535 = vmatprep.subr.mxu0 0.0
    %536 = vmatpush1.msra.mxu0 0.0
    %537 = vmatprep.subr.mxu0 0.0
    %538 = vmatpush1.msra.mxu0 0.0
    %539 = vmatprep.subr.mxu0 0.0
    %540 = vmatpush1.msra.mxu0 0.0
    %541 = vmatprep.subr.mxu0 0.0
    %542 = vmatpush1.msra.mxu0 0.0
    %543 = vmatprep.subr.mxu0 0.0
    %544 = vmatpush1.msra.mxu0 0.0
    %545 = vmatprep.subr.mxu0 0.0
    %546 = vmatpush1.msra.mxu0 0.0
    %547 = vmatprep.subr.mxu0 0.0
    %548 = vmatpush1.msra.mxu0 0.0
    %549 = vmatprep.subr.mxu0 0.0
    %550 = vmatpush1.msra.mxu0 0.0
    %551 = vmatprep.subr.mxu0 0.0
    %552 = vmatpush1.msra.mxu0 0.0
    %553 = vmatprep.subr.mxu0 0.0
    %554 = vmatpush1.msra.mxu0 0.0
    %555 = vmatprep.subr.mxu0 0.0
    %556 = vmatpush1.msra.mxu0 0.0
    %557 = vmatprep.subr.mxu0 0.0
    %558 = vmatpush1.msra.mxu0 0.0
    %559 = vmatprep.subr.mxu0 0.0
    %560 = vmatpush1.msra.mxu0 0.0
    %561 = vmatprep.subr.mxu0 0.0
    %562 = vmatpush1.msra.mxu0 0.0
    %563 = vmatprep.subr.mxu0 0.0
    %564 = vmatpush1.msra.mxu0 0.0
    %565 = vmatprep.subr.mxu0 0.0
    %566 = vmatpush1.msra.mxu0 0.0
    %567 = vmatprep.subr.mxu0 0.0
    %568 = vmatpush1.msra.mxu0 0.0
    %569 = vmatprep.subr.mxu0 0.0
    %570 = vmatpush1.msra.mxu0 0.0
    %571 = vmatprep.subr.mxu0 0.0
    %572 = vmatpush1.msra.mxu0 0.0
    %573 = vmatprep.subr.mxu0 0.0
    %574 = vmatpush1.msra.mxu0 0.0
    %575 = vmatprep.subr.mxu0 0.0
    %576 = vmatpush1.msra.mxu0 0.0
    %577 = vmatprep.subr.mxu0 0.0
    %578 = vmatpush1.msra.mxu0 0.0
    %579 = vmatprep.mubr.f32.mxu0 0.0
    %v580 = vand.u32 %v92, 4294901760
    %581 = vmatmul.mubr.f32.gmra.mrb[0].mxu0 %v580
    %v582 = vpop.f32.mrb[0].mxu0
    %v583 = vadd.f32 %v480, %v582
    %v584 = vpop.f32.mrb[0].mxu0
    %585 = vmatprep.mubr.f32.mxu0 0.0
    %v586 = vand.u32 %v95, 4294901760
    %587 = vmatmul.mubr.f32.gmra.mrb[0].mxu0 %v586
    %v588 = vpop.f32.mrb[0].mxu0
    %v589 = vadd.f32 %v488, %v588
    %v590 = vpop.f32.mrb[0].mxu0
    %591 = vdwg.mxu0
    %592 = vmatprep.subr.mxu0 0.0
    %v593 = vand.u32 %v50, 4294901760
    %594 = vmatpush1.msra.mxu0 %v593
    %595 = vmatprep.subr.mxu0 0.0
    %v596 = vand.u32 %v51, 4294901760
    %597 = vmatpush1.msra.mxu0 %v596
    %598 = vmatprep.subr.mxu0 0.0
    %v599 = vand.u32 %v52, 4294901760
    %600 = vmatpush1.msra.mxu0 %v599
    %601 = vmatprep.subr.mxu0 0.0
    %v602 = vand.u32 %v53, 4294901760
    %603 = vmatpush1.msra.mxu0 %v602
    %604 = vmatprep.subr.mxu0 0.0
    %v605 = vand.u32 %v54, 4294901760
    %606 = vmatpush1.msra.mxu0 %v605
    %607 = vmatprep.subr.mxu0 0.0
    %v608 = vand.u32 %v55, 4294901760
    %609 = vmatpush1.msra.mxu0 %v608
    %610 = vmatprep.subr.mxu0 0.0
    %v611 = vand.u32 %v56, 4294901760
    %612 = vmatpush1.msra.mxu0 %v611
    %613 = vmatprep.subr.mxu0 0.0
    %v614 = vand.u32 %v57, 4294901760
    %615 = vmatpush1.msra.mxu0 %v614
    %616 = vmatprep.subr.mxu0 0.0
    %617 = vmatpush1.msra.mxu0 0.0
    %618 = vmatprep.subr.mxu0 0.0
    %619 = vmatpush1.msra.mxu0 0.0
    %620 = vmatprep.subr.mxu0 0.0
    %621 = vmatpush1.msra.mxu0 0.0
    %622 = vmatprep.subr.mxu0 0.0
    %623 = vmatpush1.msra.mxu0 0.0
    %624 = vmatprep.subr.mxu0 0.0
    %625 = vmatpush1.msra.mxu0 0.0
    %626 = vmatprep.subr.mxu0 0.0
    %627 = vmatpush1.msra.mxu0 0.0
    %628 = vmatprep.subr.mxu0 0.0
    %629 = vmatpush1.msra.mxu0 0.0
    %630 = vmatprep.subr.mxu0 0.0
    %631 = vmatpush1.msra.mxu0 0.0
    %632 = vmatprep.subr.mxu0 0.0
    %633 = vmatpush1.msra.mxu0 0.0
    %634 = vmatprep.subr.mxu0 0.0
    %635 = vmatpush1.msra.mxu0 0.0
    %636 = vmatprep.subr.mxu0 0.0
    %637 = vmatpush1.msra.mxu0 0.0
    %638 = vmatprep.subr.mxu0 0.0
    %639 = vmatpush1.msra.mxu0 0.0
    %640 = vmatprep.subr.mxu0 0.0
    %641 = vmatpush1.msra.mxu0 0.0
    %642 = vmatprep.subr.mxu0 0.0
    %643 = vmatpush1.msra.mxu0 0.0
    %644 = vmatprep.subr.mxu0 0.0
    %645 = vmatpush1.msra.mxu0 0.0
    %646 = vmatprep.subr.mxu0 0.0
    %647 = vmatpush1.msra.mxu0 0.0
    %648 = vmatprep.subr.mxu0 0.0
    %649 = vmatpush1.msra.mxu0 0.0
    %650 = vmatprep.subr.mxu0 0.0
    %651 = vmatpush1.msra.mxu0 0.0
    %652 = vmatprep.subr.mxu0 0.0
    %653 = vmatpush1.msra.mxu0 0.0
    %654 = vmatprep.subr.mxu0 0.0
    %655 = vmatpush1.msra.mxu0 0.0
    %656 = vmatprep.subr.mxu0 0.0
    %657 = vmatpush1.msra.mxu0 0.0
    %658 = vmatprep.subr.mxu0 0.0
    %659 = vmatpush1.msra.mxu0 0.0
    %660 = vmatprep.subr.mxu0 0.0
    %661 = vmatpush1.msra.mxu0 0.0
    %662 = vmatprep.subr.mxu0 0.0
    %663 = vmatpush1.msra.mxu0 0.0
    %664 = vmatprep.mubr.f32.mxu0 0.0
    %v665 = vand.u32 %v92, 4294901760
    %666 = vmatmul.mubr.f32.gmra.mrb[0].mxu0 %v665
    %v667 = vpop.f32.mrb[0].mxu0
    %v668 = vadd.f32 %v583, %v667
    %v669 = vpop.f32.mrb[0].mxu0
    %670 = vmatprep.mubr.f32.mxu0 0.0
    %v671 = vand.u32 %v95, 4294901760
    %672 = vmatmul.mubr.f32.gmra.mrb[0].mxu0 %v671
    %v673 = vpop.f32.mrb[0].mxu0
    %v674 = vadd.f32 %v589, %v673
    %v675 = vpop.f32.mrb[0].mxu0
    %676 = vdwg.mxu0
    %vm677 = vcmask 261120
    %678 = vst.msk [vmem:[#allocation2] sm:$0xff] %vm677, %v668
    %679 = vst.msk [vmem:[#allocation2 + $0x8] sm:$0xff] %vm677, %v674
    // Predicated region
    $region10: #{emoji_embedding.1} parent=1 // pred_check
      _
    $region11: #{emoji_embedding.1} parent=1 // pred_check_branch
      %681 = sbr.rel (0) target = $region13
    $region12: #{emoji_embedding.1} parent=1 // pred_region
      %s683 = ssub.s32 256, 256
      %684 = vsyncadd [#allocation3], %s683
      %s685 = sshll.u32 [#allocation2], 4
      %s686 = int_to_ptr.vmem [resolvable:$true] %s685
      %691 = dma.vmem_to_hbm [thread:$0]  %s686, 256, %s2, [#allocation3], 128, 128, 8
    $region13: #{emoji_embedding.1} parent=1 // pred_fallthru
      _
    // Predicated region
    $region14: #{emoji_embedding.1} parent=1 // pred_check
      _
    $region15: #{emoji_embedding.1} parent=1 // pred_check_branch
      %693 = sbr.rel (0) target = $region17
    $region16: #{emoji_embedding.1} parent=1 // pred_region
      %694 = dma.done [#allocation3], 256
    $region17: #{emoji_embedding.1} parent=1 // pred_fallthru
      _
    %695 = vsyncpa [#allocation3], 1

</llo_original>
